<compile_context>
chip_gen: v7x
topology: tpu7x:2x2x1
jax: 0.10.0
libtpu: 0.0.40
codegen_flags: <defaults>
</compile_context>

<pallas_src>
import functools

import jax
import jax.numpy as jnp
from jax.experimental import pallas as pl
from jax.experimental.pallas import tpu as pltpu

# ----------------------------- config ---------------------------------------
# dinov2_vitl14 is patch=14, dim=1024, depth=24, heads=16, mlp=4x.  Same
# architecture/semantics, shrunk width/depth so the demo is tiny but lane-dense.
PATCH = 14
EMBED_DIM = 128
DEPTH = 2
NUM_HEADS = 4
HEAD_DIM = EMBED_DIM // NUM_HEADS
MLP_HIDDEN = 4 * EMBED_DIM
LN_EPS = 1e-6
LS_INIT = 1.0  # dinov2 LayerScale init_values

# Exact (erf) GELU matches torch.nn.GELU(); flip to True for the tanh
# approximation (rides the otherwise-idle EUP slot; biggest win on v5e).
GELU_TANH_APPROX = False

# Scoped-VMEM budget shared by all kernels.  32 MiB is the v6e/v7x default and
# raises v5e's 16 MiB default; tile sizes below are chosen to fit comfortably.
VMEM_LIMIT_BYTES = 32 * 1024 * 1024


def _round_up(x, m):
    return (x + m - 1) // m * m


def _pad_rows(x, m_pad):
    M = x.shape[0]
    if m_pad == M:
        return x
    return jnp.pad(x, ((0, m_pad - M),) + ((0, 0),) * (x.ndim - 1))


def _choose_lane_tile(dim, pref):
    """Tile for a lane-aligned (last-minor) axis: largest multiple-of-128
    divisor of `dim` that is <= pref, or the full dim when that is the only
    legal option.  Never falls back to a huge tile for a huge dim unless the
    dim itself is not 128-aligned (full-dim blocks are always legal)."""
    if dim <= pref:
        return dim
    if dim % 128 != 0:
        return dim  # full-dim block is the only legal choice
    best = 128
    t = 256
    while t <= pref:
        if dim % t == 0:
            best = t
        t += 128
    return best


# ----------------------------- fused matmul kernel --------------------------
def _make_fused_mm_kernel(nk, has_ln, ln_in_scratch, activation, has_ls,
                          has_res, eps, gelu_tanh):
    def kernel(*refs):
        it = iter(refs)
        x_ref = next(it)
        w_ref = next(it)
        b_ref = next(it)
        g_ref = next(it) if has_ln else None
        bb_ref = next(it) if has_ln else None
        ls_ref = next(it) if has_ls else None
        res_ref = next(it) if has_res else None
        o_ref = next(it)
        acc_ref = next(it) if nk > 1 else None
        xn_ref = next(it) if ln_in_scratch else None

        def _layernorm(xv):
            # LayerNorm prologue in f32 on the VPU (hidden under the MXU).
            xf = xv.astype(jnp.float32)
            mu = jnp.mean(xf, axis=-1, keepdims=True)
            xc = xf - mu
            var = jnp.mean(xc * xc, axis=-1, keepdims=True)
            xf = xc * jax.lax.rsqrt(var + eps)
            xf = (xf * g_ref[...].astype(jnp.float32)
                  + bb_ref[...].astype(jnp.float32))
            return xf.astype(w_ref.dtype)       # cast only at the MXU boundary

        if has_ln:
            if ln_in_scratch:
                # hoist: normalize once per M-tile (j == 0), reuse across j.
                @pl.when(pl.program_id(1) == 0)
                def _():
                    xn_ref[...] = _layernorm(x_ref[...])
                x_mx = xn_ref[...]
            else:
                x_mx = _layernorm(x_ref[...])
        else:
            x_mx = x_ref[...]                   # already bf16

        def _epilogue(acc):
            acc = acc + b_ref[...].astype(jnp.float32)
            if activation == "gelu":
                if gelu_tanh:
                    acc = 0.5 * acc * (1.0 + jnp.tanh(
                        0.7978845608028654 * (acc + 0.044715 * acc * acc * acc)))
                else:
                    # exact (erf) GELU, matching torch.nn.GELU default, in f32
                    acc = acc * 0.5 * (1.0 + jax.lax.erf(acc * 0.7071067811865476))
            if has_ls:
                acc = acc * ls_ref[...].astype(jnp.float32)
            if has_res:
                acc = acc + res_ref[...].astype(jnp.float32)
            o_ref[...] = acc.astype(o_ref.dtype)

        if nk == 1:
            # single K tile: no accumulator scratch round-trip
            _epilogue(jnp.dot(x_mx, w_ref[...],
                              preferred_element_type=jnp.float32))
        else:
            kk = pl.program_id(2)

            @pl.when(kk == 0)
            def _():
                acc_ref[...] = jnp.zeros_like(acc_ref)

            acc_ref[...] += jnp.dot(x_mx, w_ref[...],
                                    preferred_element_type=jnp.float32)

            @pl.when(kk == nk - 1)
            def _():
                _epilogue(acc_ref[...])

    return kernel


def fused_matmul(x, w, b, *, gamma=None, beta=None, ls=None, residual=None,
                 activation=None, out_dtype=None, tm=256, tn=512, tk=512):
    """out = epilogue( prologue(x) @ w + b )

    prologue: optional LayerNorm(gamma, beta) of x rows (forces tk = K)
    epilogue: optional GELU, optional LayerScale (ls), optional residual add.
    x/w in bf16 feed the MXU; accumulation and all elementwise math in f32.
    M is padded to a tile multiple (never a full-dim fallback tile); N/K tiles
    are 128-multiple divisors of the dims.
    """
    M, K = x.shape
    K2, N = w.shape
    assert K == K2
    out_dtype = out_dtype or x.dtype

    has_ln = gamma is not None
    has_ls = ls is not None
    has_res = residual is not None

    # ---- tile selection ----
    tm = min(tm, _round_up(M, 8))
    m_pad = _round_up(M, tm)
    tn = _choose_lane_tile(N, tn)
    if has_ln:
        tk = K          # LayerNorm prologue needs the whole row in one K tile
    else:
        tk = _choose_lane_tile(K, tk)
    nm, nn, nk = m_pad // tm, N // tn, K // tk
    ln_in_scratch = has_ln and nn > 1

    if m_pad != M:
        x = _pad_rows(x, m_pad)
        if has_res:
            residual = _pad_rows(residual, m_pad)

    operands = [x, w, b.reshape(1, N)]
    in_specs = [
        pl.BlockSpec((tm, tk), lambda i, j, k: (i, k)),
        pl.BlockSpec((tk, tn), lambda i, j, k: (k, j)),
        pl.BlockSpec((1, tn), lambda i, j, k: (0, j)),
    ]
    if has_ln:
        operands += [gamma.reshape(1, K), beta.reshape(1, K)]
        in_specs += [pl.BlockSpec((1, tk), lambda i, j, k: (0, k)),
                     pl.BlockSpec((1, tk), lambda i, j, k: (0, k))]
    if has_ls:
        operands.append(ls.reshape(1, N))
        in_specs.append(pl.BlockSpec((1, tn), lambda i, j, k: (0, j)))
    if has_res:
        operands.append(residual)
        in_specs.append(pl.BlockSpec((tm, tn), lambda i, j, k: (i, j)))

    scratch_shapes = []
    if nk > 1:
        scratch_shapes.append(pltpu.VMEM((tm, tn), jnp.float32))
    if ln_in_scratch:
        scratch_shapes.append(pltpu.VMEM((tm, tk), w.dtype))

    kernel = _make_fused_mm_kernel(
        nk=nk, has_ln=has_ln, ln_in_scratch=ln_in_scratch,
        activation=activation, has_ls=has_ls, has_res=has_res,
        eps=LN_EPS, gelu_tanh=GELU_TANH_APPROX)

    out = pl.pallas_call(
        kernel,
        out_shape=jax.ShapeDtypeStruct((m_pad, N), out_dtype),
        grid=(nm, nn, nk),
        in_specs=in_specs,
        out_specs=pl.BlockSpec((tm, tn), lambda i, j, k: (i, j)),
        scratch_shapes=scratch_shapes,
        compiler_params=pltpu.CompilerParams(
            dimension_semantics=("parallel",
                                 "arbitrary" if ln_in_scratch else "parallel",
                                 "arbitrary"),
            vmem_limit_bytes=VMEM_LIMIT_BYTES),
    )(*operands)
    return out if m_pad == M else out[:M]


# ----------------------------- layernorm (final norm only) ------------------
def _ln_kernel(x_ref, g_ref, b_ref, o_ref, *, eps):
    xf = x_ref[...].astype(jnp.float32)
    mu = jnp.mean(xf, axis=-1, keepdims=True)
    xc = xf - mu
    var = jnp.mean(xc * xc, axis=-1, keepdims=True)
    y = xc * jax.lax.rsqrt(var + eps)
    o_ref[...] = (y * g_ref[...].astype(jnp.float32)
                  + b_ref[...].astype(jnp.float32)).astype(o_ref.dtype)


def layernorm(x, gamma, beta, *, out_dtype=jnp.float32, tm=256):
    M, D = x.shape
    tm = min(tm, _round_up(M, 8))
    m_pad = _round_up(M, tm)
    xp = _pad_rows(x, m_pad)
    kernel = functools.partial(_ln_kernel, eps=LN_EPS)
    out = pl.pallas_call(
        kernel,
        out_shape=jax.ShapeDtypeStruct((m_pad, D), out_dtype),
        grid=(m_pad // tm,),
        in_specs=[
            pl.BlockSpec((tm, D), lambda i: (i, 0)),
            pl.BlockSpec((1, D), lambda i: (0, 0)),
            pl.BlockSpec((1, D), lambda i: (0, 0)),
        ],
        out_specs=pl.BlockSpec((tm, D), lambda i: (i, 0)),
        compiler_params=pltpu.CompilerParams(
            dimension_semantics=("parallel",),
            vmem_limit_bytes=VMEM_LIMIT_BYTES),
    )(xp, gamma.reshape(1, D), beta.reshape(1, D))
    return out if m_pad == M else out[:M]


# ----------------------------- attention + proj + residual -------------------
def _attn_proj_kernel(qkv_ref, pw_ref, pb_ref, ls_ref, res_ref, o_ref, *,
                      t_valid, num_heads, head_dim, embed_dim):
    # blocks are (1, T_pad, 3D) with all heads packed on the lane axis.
    # 1/sqrt(head_dim) is pre-folded into wq/bq, so no score scaling here.
    T = qkv_ref.shape[1]
    qkv = qkv_ref[0]                                   # (T, 3D) bf16

    key_ids = jax.lax.broadcasted_iota(jnp.int32, (T, T), 1)
    mask_bias = jnp.where(key_ids < t_valid, 0.0, -1e30).astype(jnp.float32)

    outs = []
    for h in range(num_heads):                         # small static unroll
        lo = h * head_dim
        qh = qkv[:, lo:lo + head_dim]
        kh = qkv[:, embed_dim + lo:embed_dim + lo + head_dim]
        vh = qkv[:, 2 * embed_dim + lo:2 * embed_dim + lo + head_dim]
        # scores = qh @ kh.T (bf16 operands, f32 accumulate)
        s = jax.lax.dot_general(qh, kh, (((1,), (1,)), ((), ())),
                                preferred_element_type=jnp.float32)
        s = s + mask_bias
        s = s - jnp.max(s, axis=-1, keepdims=True)
        p = jnp.exp(s)                                  # f32 on the EUP
        denom = jnp.sum(p, axis=-1, keepdims=True)
        p = p * pl.reciprocal(denom, approx=True)
        outs.append(jnp.dot(p.astype(vh.dtype), vh,
                            preferred_element_type=jnp.float32))   # (T, hd)
    o = jnp.concatenate(outs, axis=-1).astype(pw_ref.dtype)        # (T, D) bf16

    # fused output projection + LayerScale + residual (never hits HBM between)
    proj = jnp.dot(o, pw_ref[...], preferred_element_type=jnp.float32)
    proj = (proj + pb_ref[...].astype(jnp.float32)) * ls_ref[...].astype(jnp.float32)
    o_ref[0] = (proj + res_ref[0].astype(jnp.float32)).astype(o_ref.dtype)


def attention_proj(qkv, proj_w, proj_b, ls, x_res, *, t_valid):
    """qkv: (B, T_pad, 3D) head-packed; returns x_res + ls * proj(attn(qkv))."""
    B, T, threeD = qkv.shape
    D = threeD // 3
    kernel = functools.partial(_attn_proj_kernel, t_valid=t_valid,
                               num_heads=NUM_HEADS, head_dim=HEAD_DIM,
                               embed_dim=D)
    qkv_spec = pl.BlockSpec((1, T, threeD), lambda b: (b, 0, 0))
    xd_spec = pl.BlockSpec((1, T, D), lambda b: (b, 0, 0))
    # TODO(synk): at real DINOv2-L sizes (T~257+) switch to a flash-style
    # (B, q_tile, kv_tile) grid with T padded to a multiple of 128 and online
    # softmax; t_valid should then come in via scalar prefetch instead of
    # being baked as a Python constant.
    return pl.pallas_call(
        kernel,
        out_shape=jax.ShapeDtypeStruct((B, T, D), x_res.dtype),
        grid=(B,),
        in_specs=[qkv_spec,
                  pl.BlockSpec((D, D), lambda b: (0, 0)),
                  pl.BlockSpec((1, D), lambda b: (0, 0)),
                  pl.BlockSpec((1, D), lambda b: (0, 0)),
                  xd_spec],
        out_specs=xd_spec,
        compiler_params=pltpu.CompilerParams(
            dimension_semantics=("parallel",),
            vmem_limit_bytes=VMEM_LIMIT_BYTES),
    )(qkv, proj_w, proj_b.reshape(1, D), ls.reshape(1, D), x_res)


# ----------------------------- parameters -----------------------------------
def init_params(key, n_patch_tokens):
    ks = iter(jax.random.split(key, 8 + DEPTH * 16))

    def nrm(shape, std=0.02, dtype=jnp.float32):
        return (jax.random.normal(next(ks), shape, jnp.float32) * std).astype(dtype)

    bf = jnp.bfloat16
    params = {
        # conv weight stored flattened as (C*14*14, D), i.e. patches @ W
        "patch_w": nrm((3 * PATCH * PATCH, EMBED_DIM), dtype=bf),
        "patch_b": nrm((EMBED_DIM,)),
        "cls_token": nrm((1, 1, EMBED_DIM), dtype=bf),
        # pos_embed built at the exact token count -> dinov2's
        # interpolate_pos_encoding takes its identity fast-path.
        "pos_embed": nrm((1, 1 + n_patch_tokens, EMBED_DIM), dtype=bf),
        "norm_g": jnp.ones((EMBED_DIM,), jnp.float32),
        "norm_b": jnp.zeros((EMBED_DIM,), jnp.float32),
        "blocks": [],
    }
    scale = HEAD_DIM ** -0.5
    for _ in range(DEPTH):
        wq, bq = nrm((EMBED_DIM, EMBED_DIM)), nrm((EMBED_DIM,))
        wk, bk = nrm((EMBED_DIM, EMBED_DIM)), nrm((EMBED_DIM,))
        wv, bv = nrm((EMBED_DIM, EMBED_DIM)), nrm((EMBED_DIM,))
        # Q/K/V fused column-wise; 1/sqrt(head_dim) folded into the Q slice so
        # the attention kernel never multiplies scores by the scale.
        wqkv = jnp.concatenate([wq * scale, wk, wv], axis=1).astype(bf)
        bqkv = jnp.concatenate([bq * scale, bk, bv], axis=0)
        params["blocks"].append({
            "norm1_g": jnp.ones((EMBED_DIM,), jnp.float32),
            "norm1_b": jnp.zeros((EMBED_DIM,), jnp.float32),
            "wqkv": wqkv,                       # (D, 3D) bf16
            "bqkv": bqkv,                       # (3D,)  f32
            "proj_w": nrm((EMBED_DIM, EMBED_DIM), dtype=bf),
            "proj_b": nrm((EMBED_DIM,)),
            "ls1": jnp.full((EMBED_DIM,), LS_INIT, jnp.float32),
            "norm2_g": jnp.ones((EMBED_DIM,), jnp.float32),
            "norm2_b": jnp.zeros((EMBED_DIM,), jnp.float32),
            "fc1_w": nrm((EMBED_DIM, MLP_HIDDEN), dtype=bf),
            "fc1_b": nrm((MLP_HIDDEN,)),
            "fc2_w": nrm((MLP_HIDDEN, EMBED_DIM), dtype=bf),
            "fc2_b": nrm((EMBED_DIM,)),
            "ls2": jnp.full((EMBED_DIM,), LS_INIT, jnp.float32),
        })
    return params


# ----------------------------- forward --------------------------------------
def dinov2_forward(params, image):
    # image: NCHW float32 (B, 3, H, W); H, W divisible by 14
    B, C, H, W = image.shape
    nh, nw = H // PATCH, W // PATCH
    n_tok = nh * nw

    # Patch embed: 14x14 / stride-14 conv == im2col (glue) + fused matmul.
    # TODO(synk): move the patch gather into a Pallas kernel (manual DMA of
    # per-patch-row slabs) so the strided im2col copy never hits HBM; kept in
    # XLA here because the (14,14) window cannot be expressed as a legal
    # (8,128)-aligned BlockSpec tile.
    patches = image.reshape(B, C, nh, PATCH, nw, PATCH)
    patches = patches.transpose(0, 2, 4, 1, 3, 5)
    patches = patches.reshape(B * n_tok, C * PATCH * PATCH).astype(jnp.bfloat16)
    x_tok = fused_matmul(patches, params["patch_w"], params["patch_b"])  # (B*N, D) bf16
    x_tok = x_tok.reshape(B, n_tok, EMBED_DIM)

    # prepend cls token, add positional embedding, pad tokens to multiple of 16
    cls = jnp.broadcast_to(params["cls_token"], (B, 1, EMBED_DIM))
    x = jnp.concatenate([cls, x_tok], axis=1) + params["pos_embed"]      # (B, T, D)
    T = 1 + n_tok
    T_pad = _round_up(T, 16)
    x = jnp.pad(x, ((0, 0), (0, T_pad - T), (0, 0))).astype(jnp.bfloat16)

    M = B * T_pad

    # 4 pallas_calls per block: fused QKV matmul, attention(+proj+ls+residual),
    # fc1(+LN+GELU), fc2(+ls+residual).
    for blk in params["blocks"]:
        xr = x.reshape(M, EMBED_DIM)
        # ---- attention branch: x = x + ls1 * proj(attn(norm1(x)))
        qkv = fused_matmul(xr, blk["wqkv"], blk["bqkv"],
                           gamma=blk["norm1_g"], beta=blk["norm1_b"])    # (M, 3D)
        x = attention_proj(qkv.reshape(B, T_pad, 3 * EMBED_DIM),
                           blk["proj_w"], blk["proj_b"], blk["ls1"],
                           x, t_valid=T)                                 # (B, T_pad, D)

        # ---- MLP branch: x = x + ls2 * fc2(gelu(fc1(norm2(x))))
        xr = x.reshape(M, EMBED_DIM)
        h1 = fused_matmul(xr, blk["fc1_w"], blk["fc1_b"],
                          gamma=blk["norm2_g"], beta=blk["norm2_b"],
                          activation="gelu")
        xr = fused_matmul(h1, blk["fc2_w"], blk["fc2_b"],
                          ls=blk["ls2"], residual=xr)
        x = xr.reshape(B, T_pad, EMBED_DIM)

    # final norm (f32 out), drop cls + padding, reshape to NCHW feature map
    xn = layernorm(x.reshape(M, EMBED_DIM), params["norm_g"], params["norm_b"],
                   out_dtype=jnp.float32)
    xn = xn.reshape(B, T_pad, EMBED_DIM)
    patch_tokens = xn[:, 1:1 + n_tok, :]                                 # x_norm_patchtokens
    feats = patch_tokens.reshape(B, nh, nw, EMBED_DIM).transpose(0, 3, 1, 2)
    return feats                                                         # (B, D, H//14, W//14)


# TODO(synk): bicubic pos-embed interpolation for image grids that differ from
# the pos_embed grid is not implemented (identity fast-path is used here).
# TODO(synk): residual stream is carried in bf16 (f32 inside each epilogue);
# at DEPTH=24 validate against the PyTorch f32 residual path.

# ----------------------------- main ------------------------------------------
if __name__ == "__main__":
    key = jax.random.PRNGKey(0)
    k_img, k_par = jax.random.split(key)

    B, C, H, W = 2, 3, 28, 28            # 2x2 = 4 patch tokens per image
    image = jax.random.normal(k_img, (B, C, H, W), jnp.float32)

    params = init_params(k_par, n_patch_tokens=(H // PATCH) * (W // PATCH))

    feats = dinov2_forward(params, image)
    feats = jax.block_until_ready(feats)

    assert feats.shape == (B, EMBED_DIM, H // PATCH, W // PATCH), feats.shape
    assert feats.dtype == jnp.float32
    print("KERNEL_OK")
</pallas_src>

<mosaic_0001>
module attributes {stable_mosaic.version = 11 : i64} {
  func.func @kernel(%arg0: i32, %arg1: i32, %arg2: i32, %arg3: memref<8x588xbf16, #tpu.memory_space<vmem>>, %arg4: memref<588x128xbf16, #tpu.memory_space<vmem>>, %arg5: memref<1x128xf32, #tpu.memory_space<vmem>>, %arg6: memref<8x128xbf16, #tpu.memory_space<vmem>>) attributes {dimension_semantics = [#tpu.dimension_semantics<parallel>, #tpu.dimension_semantics<parallel>, #tpu.dimension_semantics<arbitrary>], iteration_bounds = array<i64: 1, 1, 1>, scalar_prefetch = 0 : i64, scratch_operands = 0 : i64, tpu.core_type = #tpu.core_type<tc>, window_params = [{transform_indices = @transform_0, window_bounds = array<i64: 8, 588>}, {transform_indices = @transform_1, window_bounds = array<i64: 588, 128>}, {transform_indices = @transform_2, window_bounds = array<i64: 1, 128>}, {transform_indices = @transform_3, window_bounds = array<i64: 8, 128>}]} {
    %c0 = arith.constant 0 : index
    %c0_0 = arith.constant 0 : index
    %0 = vector.load %arg3[%c0, %c0_0] : memref<8x588xbf16, #tpu.memory_space<vmem>>, vector<8x588xbf16>
    %c0_1 = arith.constant 0 : index
    %c0_2 = arith.constant 0 : index
    %1 = vector.load %arg4[%c0_1, %c0_2] : memref<588x128xbf16, #tpu.memory_space<vmem>>, vector<588x128xbf16>
    %cst = arith.constant dense<0.000000e+00> : vector<8x128xf32>
    %2 = tpu.matmul %0, %1, %cst {dimension_numbers = #tpu.dot_dimension_numbers<[1], [0], [0], [1], [0, 0, 1, 1], [], []>} : vector<8x588xbf16>, vector<588x128xbf16>, vector<8x128xf32> -> vector<8x128xf32>
    %c0_3 = arith.constant 0 : index
    %c0_4 = arith.constant 0 : index
    %3 = vector.load %arg5[%c0_3, %c0_4] : memref<1x128xf32, #tpu.memory_space<vmem>>, vector<1x128xf32>
    %4 = vector.broadcast %3 : vector<1x128xf32> to vector<8x128xf32>
    %5 = arith.addf %2, %4 : vector<8x128xf32>
    %6 = arith.truncf %5 : vector<8x128xf32> to vector<8x128xbf16>
    %c0_5 = arith.constant 0 : index
    %c0_6 = arith.constant 0 : index
    %7 = vector.load %arg6[%c0_5, %c0_6] : memref<8x128xbf16, #tpu.memory_space<vmem>>, vector<8x128xbf16>
    tpu.vector_store %arg6[%c0_5, %c0_6], %6 {strides = array<i32>} : memref<8x128xbf16, #tpu.memory_space<vmem>>, vector<8x128xbf16>,
    return
  }
  func.func @transform_0(%arg0: i32, %arg1: i32, %arg2: i32) -> (i32, i32) {
    %c0_i32 = arith.constant 0 : i32
    return %arg0, %arg2 : i32, i32
  }
  func.func @transform_1(%arg0: i32, %arg1: i32, %arg2: i32) -> (i32, i32) {
    %c0_i32 = arith.constant 0 : i32
    return %arg2, %arg1 : i32, i32
  }
  func.func @transform_2(%arg0: i32, %arg1: i32, %arg2: i32) -> (i32, i32) {
    %c0_i32 = arith.constant 0 : i32
    %c0_i32_0 = arith.constant 0 : i32
    return %c0_i32, %arg1 : i32, i32
  }
  func.func @transform_3(%arg0: i32, %arg1: i32, %arg2: i32) -> (i32, i32) {
    %c0_i32 = arith.constant 0 : i32
    return %arg0, %arg1 : i32, i32
  }
}

</mosaic_0001>

<llo_original>
// kernel: tpu_custom_call.1
$region0: #{tpu_custom_call.1}
  #allocation0 [shape = 'u32[]', space=smem, size = 0x4, offset = 0x4, fixed_abs, tag = 'smem constant byte address 0x4 - core index']
  #allocation1 [shape = 'u32[144,128]{1,0:T(1,128)}', space=vmem, size = 0x12000, scoped, tag = 'internal scratch']
  %s0 = inlined_call_operand.hbm [shape: bf16[8,588], index: 0, kind: input, shape index: {}]
  %s1 = inlined_call_operand.hbm [shape: bf16[588,128], index: 1, kind: input, shape index: {}]
  %s2 = inlined_call_operand.vmem [shape: f32[1,128], index: 2, kind: input, shape index: {}]
  %s3 = inlined_call_operand.hbm [shape: bf16[8,128], index: 3, kind: output, shape index: {}]
  %s4 = sld [smem:[#allocation0]]
  $region30: #{tpu_custom_call.1} parent=0
    _
  %s6 = ssub.s32 1, %s4
  %s7 = scalar_select 0, %s6, %s4
  $region1: #{tpu_custom_call.1} parent=0
    #allocation2 [shape = 'u8[10240]{0}', space=vmem, size = 0x2800, scoped, tag = 'input window, operand 0, single buffered']
    #allocation3 [shape = 's32[1]{0}', space=sflag, size = 0x4, scoped, tag = 'scoped memory for tpu_custom_call.1']
    #allocation4 [shape = 's32[1]{0}', space=sflag, size = 0x4, scoped, tag = 'scoped memory for tpu_custom_call.1']
    #allocation5 [shape = 'u8[151552]{0}', space=vmem, size = 0x25000, scoped, tag = 'input window, operand 1, single buffered']
    #allocation6 [shape = 's32[1]{0}', space=sflag, size = 0x4, scoped, tag = 'scoped memory for tpu_custom_call.1']
    #allocation7 [shape = 'u8[2048]{0}', space=vmem, size = 0x800, scoped, tag = 'output window, operand 0, single buffered']
    %8 = vsyncpa [#allocation3], 0
    %9 = vsyncpa [#allocation6], 0
    %10 = vsyncpa [#allocation4], 0
    // Predicated region
    $region2: #{tpu_custom_call.1} parent=1 // pred_check
      _
    $region3: #{tpu_custom_call.1} parent=1 // pred_check_branch
      %12 = sbr.rel (0) target = $region5
    $region4: #{tpu_custom_call.1} parent=1 // pred_region
      %s14 = ssub.s32 320, 320
      %15 = vsyncadd [#allocation3], %s14
      %s17 = sshll.u32 [#allocation2], 4
      %s18 = int_to_ptr.vmem [resolvable:$true] %s17
      %20 = dma.hbm_to_vmem [thread:$0]  %s0, 320, %s18, [#allocation3]
    $region5: #{tpu_custom_call.1} parent=1 // pred_fallthru
      _
    // Predicated region
    $region6: #{tpu_custom_call.1} parent=1 // pred_check
      _
    $region7: #{tpu_custom_call.1} parent=1 // pred_check_branch
      %22 = sbr.rel (0) target = $region9
    $region8: #{tpu_custom_call.1} parent=1 // pred_region
      %s24 = ssub.s32 4736, 4736
      %25 = vsyncadd [#allocation6], %s24
      %s26 = sshll.u32 [#allocation5], 4
      %s27 = int_to_ptr.vmem [resolvable:$true] %s26
      %32 = dma.hbm_to_vmem [thread:$0]  %s1, 4736, %s27, [#allocation6], 64, 64, 4
    $region9: #{tpu_custom_call.1} parent=1 // pred_fallthru
      _
    // Predicated region
    $region10: #{tpu_custom_call.1} parent=1 // pred_check
      _
    $region11: #{tpu_custom_call.1} parent=1 // pred_check_branch
      %34 = sbr.rel (0) target = $region13
    $region12: #{tpu_custom_call.1} parent=1 // pred_region
      _
    $region13: #{tpu_custom_call.1} parent=1 // pred_fallthru
      _
    // Predicated region
    $region14: #{tpu_custom_call.1} parent=1 // pred_check
      _
    $region15: #{tpu_custom_call.1} parent=1 // pred_check_branch
      %36 = sbr.rel (0) target = $region17
    $region16: #{tpu_custom_call.1} parent=1 // pred_region
      %37 = dma.done [#allocation3], 320
    $region17: #{tpu_custom_call.1} parent=1 // pred_fallthru
      _
    // Predicated region
    $region18: #{tpu_custom_call.1} parent=1 // pred_check
      _
    $region19: #{tpu_custom_call.1} parent=1 // pred_check_branch
      %39 = sbr.rel (0) target = $region21
    $region20: #{tpu_custom_call.1} parent=1 // pred_region
      %40 = dma.done [#allocation6], 4736
    $region21: #{tpu_custom_call.1} parent=1 // pred_fallthru
      _
    %v42 = vld [vmem:[#allocation2] sm:$0xff]
    %v43 = vld [vmem:[#allocation2 + $0x8] sm:$0xff]
    %v44 = vld [vmem:[#allocation2 + $0x10] sm:$0xf]
    %v45 = vld [vmem:[#allocation5] sm:$0xf]
    %v46 = vld [vmem:[#allocation5 + $0x4] sm:$0xf]
    %v47 = vld [vmem:[#allocation5 + $0x8] sm:$0xf]
    %v48 = vld [vmem:[#allocation5 + $0xc] sm:$0xf]
    %v49 = vld [vmem:[#allocation5 + $0x10] sm:$0xf]
    %v50 = vld [vmem:[#allocation5 + $0x14] sm:$0xf]
    %v51 = vld [vmem:[#allocation5 + $0x18] sm:$0xf]
    %v52 = vld [vmem:[#allocation5 + $0x1c] sm:$0xf]
    %v53 = vld [vmem:[#allocation5 + $0x20] sm:$0xf]
    %v54 = vld [vmem:[#allocation5 + $0x24] sm:$0xf]
    %v55 = vld [vmem:[#allocation5 + $0x28] sm:$0xf]
    %v56 = vld [vmem:[#allocation5 + $0x2c] sm:$0xf]
    %v57 = vld [vmem:[#allocation5 + $0x30] sm:$0xf]
    %v58 = vld [vmem:[#allocation5 + $0x34] sm:$0xf]
    %v59 = vld [vmem:[#allocation5 + $0x38] sm:$0xf]
    %v60 = vld [vmem:[#allocation5 + $0x3c] sm:$0xf]
    %v61 = vld [vmem:[#allocation5 + $0x40] sm:$0xf]
    %v62 = vld [vmem:[#allocation5 + $0x44] sm:$0xf]
    %v63 = vld [vmem:[#allocation5 + $0x48] sm:$0xf]
    %v64 = vld [vmem:[#allocation5 + $0x4c] sm:$0xf]
    %v65 = vld [vmem:[#allocation5 + $0x50] sm:$0xf]
    %v66 = vld [vmem:[#allocation5 + $0x54] sm:$0xf]
    %v67 = vld [vmem:[#allocation5 + $0x58] sm:$0xf]
    %v68 = vld [vmem:[#allocation5 + $0x5c] sm:$0xf]
    %v69 = vld [vmem:[#allocation5 + $0x60] sm:$0xf]
    %v70 = vld [vmem:[#allocation5 + $0x64] sm:$0xf]
    %v71 = vld [vmem:[#allocation5 + $0x68] sm:$0xf]
    %v72 = vld [vmem:[#allocation5 + $0x6c] sm:$0xf]
    %v73 = vld [vmem:[#allocation5 + $0x70] sm:$0xf]
    %v74 = vld [vmem:[#allocation5 + $0x74] sm:$0xf]
    %v75 = vld [vmem:[#allocation5 + $0x78] sm:$0xf]
    %v76 = vld [vmem:[#allocation5 + $0x7c] sm:$0xf]
    %v77 = vld [vmem:[#allocation5 + $0x80] sm:$0xf]
    %v78 = vld [vmem:[#allocation5 + $0x84] sm:$0xf]
    %v79 = vld [vmem:[#allocation5 + $0x88] sm:$0xf]
    %v80 = vld [vmem:[#allocation5 + $0x8c] sm:$0xf]
    %v81 = vld [vmem:[#allocation5 + $0x90] sm:$0xf]
    %v82 = vld [vmem:[#allocation5 + $0x94] sm:$0xf]
    %v83 = vld [vmem:[#allocation5 + $0x98] sm:$0xf]
    %v84 = vld [vmem:[#allocation5 + $0x9c] sm:$0xf]
    %v85 = vld [vmem:[#allocation5 + $0xa0] sm:$0xf]
    %v86 = vld [vmem:[#allocation5 + $0xa4] sm:$0xf]
    %v87 = vld [vmem:[#allocation5 + $0xa8] sm:$0xf]
    %v88 = vld [vmem:[#allocation5 + $0xac] sm:$0xf]
    %v89 = vld [vmem:[#allocation5 + $0xb0] sm:$0xf]
    %v90 = vld [vmem:[#allocation5 + $0xb4] sm:$0xf]
    %v91 = vld [vmem:[#allocation5 + $0xb8] sm:$0xf]
    %v92 = vld [vmem:[#allocation5 + $0xbc] sm:$0xf]
    %v93 = vld [vmem:[#allocation5 + $0xc0] sm:$0xf]
    %v94 = vld [vmem:[#allocation5 + $0xc4] sm:$0xf]
    %v95 = vld [vmem:[#allocation5 + $0xc8] sm:$0xf]
    %v96 = vld [vmem:[#allocation5 + $0xcc] sm:$0xf]
    %v97 = vld [vmem:[#allocation5 + $0xd0] sm:$0xf]
    %v98 = vld [vmem:[#allocation5 + $0xd4] sm:$0xf]
    %v99 = vld [vmem:[#allocation5 + $0xd8] sm:$0xf]
    %v100 = vld [vmem:[#allocation5 + $0xdc] sm:$0xf]
    %v101 = vld [vmem:[#allocation5 + $0xe0] sm:$0xf]
    %v102 = vld [vmem:[#allocation5 + $0xe4] sm:$0xf]
    %v103 = vld [vmem:[#allocation5 + $0xe8] sm:$0xf]
    %v104 = vld [vmem:[#allocation5 + $0xec] sm:$0xf]
    %v105 = vld [vmem:[#allocation5 + $0xf0] sm:$0xf]
    %v106 = vld [vmem:[#allocation5 + $0xf4] sm:$0xf]
    %v107 = vld [vmem:[#allocation5 + $0xf8] sm:$0xf]
    %v108 = vld [vmem:[#allocation5 + $0xfc] sm:$0xf]
    %v109 = vld [vmem:[#allocation5 + $0x100] sm:$0xf]
    %v110 = vld [vmem:[#allocation5 + $0x104] sm:$0xf]
    %v111 = vld [vmem:[#allocation5 + $0x108] sm:$0xf]
    %v112 = vld [vmem:[#allocation5 + $0x10c] sm:$0xf]
    %v113 = vld [vmem:[#allocation5 + $0x110] sm:$0xf]
    %v114 = vld [vmem:[#allocation5 + $0x114] sm:$0xf]
    %v115 = vld [vmem:[#allocation5 + $0x118] sm:$0xf]
    %v116 = vld [vmem:[#allocation5 + $0x11c] sm:$0xf]
    %v117 = vld [vmem:[#allocation5 + $0x120] sm:$0xf]
    %v118 = vld [vmem:[#allocation5 + $0x124] sm:$0x3]
    %v119 = vld [vmem:[%s2] sm:$0x1]
    %v121 = vlaneseq
    %v122 = vshrl.u32 %v121, 7
    %v123 = vsub.s32 0, %v122
    %v124 = vrot.slane %v119, %v123
    %v129 = vunpack.c.l.b16 %v42
    %v130 = vunpack.c.h.b16 %v42
    %v131 = vunpack.c.l.b16 %v43
    %v132 = vunpack.c.h.b16 %v43
    %v133 = vunpack.c.l.b16 %v44
    %v134 = vpack.c.b16 %v129, %v129
    %v135 = vpack.c.b16 %v130, %v130
    %v136 = vpack.c.b16 %v131, %v131
    %v137 = vpack.c.b16 %v132, %v132
    %v138 = vpack.c.b16 %v133, %v133
    %v217 = vunpack.c.l.b16 %v45
    %v218 = vunpack.c.l.b16 %v46
    %v219 = vunpack.c.l.b16 %v47
    %v220 = vunpack.c.l.b16 %v48
    %v221 = vunpack.c.l.b16 %v49
    %v222 = vunpack.c.l.b16 %v50
    %v223 = vunpack.c.l.b16 %v51
    %v224 = vunpack.c.l.b16 %v52
    %v225 = vunpack.c.l.b16 %v53
    %v226 = vunpack.c.l.b16 %v54
    %v227 = vunpack.c.l.b16 %v55
    %v228 = vunpack.c.l.b16 %v56
    %v229 = vunpack.c.l.b16 %v57
    %v230 = vunpack.c.l.b16 %v58
    %v231 = vunpack.c.l.b16 %v59
    %v232 = vunpack.c.l.b16 %v60
    %v233 = vunpack.c.l.b16 %v61
    %v234 = vunpack.c.l.b16 %v62
    %v235 = vunpack.c.l.b16 %v63
    %v236 = vunpack.c.l.b16 %v64
    %v237 = vunpack.c.l.b16 %v65
    %v238 = vunpack.c.l.b16 %v66
    %v239 = vunpack.c.l.b16 %v67
    %v240 = vunpack.c.l.b16 %v68
    %v241 = vunpack.c.l.b16 %v69
    %v242 = vunpack.c.l.b16 %v70
    %v243 = vunpack.c.l.b16 %v71
    %v244 = vunpack.c.l.b16 %v72
    %v245 = vunpack.c.l.b16 %v73
    %v246 = vunpack.c.l.b16 %v74
    %v247 = vunpack.c.l.b16 %v75
    %v248 = vunpack.c.l.b16 %v76
    %v249 = vunpack.c.l.b16 %v77
    %v250 = vunpack.c.l.b16 %v78
    %v251 = vunpack.c.l.b16 %v79
    %v252 = vunpack.c.l.b16 %v80
    %v253 = vunpack.c.l.b16 %v81
    %v254 = vunpack.c.l.b16 %v82
    %v255 = vunpack.c.l.b16 %v83
    %v256 = vunpack.c.l.b16 %v84
    %v257 = vunpack.c.l.b16 %v85
    %v258 = vunpack.c.l.b16 %v86
    %v259 = vunpack.c.l.b16 %v87
    %v260 = vunpack.c.l.b16 %v88
    %v261 = vunpack.c.l.b16 %v89
    %v262 = vunpack.c.l.b16 %v90
    %v263 = vunpack.c.l.b16 %v91
    %v264 = vunpack.c.l.b16 %v92
    %v265 = vunpack.c.l.b16 %v93
    %v266 = vunpack.c.l.b16 %v94
    %v267 = vunpack.c.l.b16 %v95
    %v268 = vunpack.c.l.b16 %v96
    %v269 = vunpack.c.l.b16 %v97
    %v270 = vunpack.c.l.b16 %v98
    %v271 = vunpack.c.l.b16 %v99
    %v272 = vunpack.c.l.b16 %v100
    %v273 = vunpack.c.l.b16 %v101
    %v274 = vunpack.c.l.b16 %v102
    %v275 = vunpack.c.l.b16 %v103
    %v276 = vunpack.c.l.b16 %v104
    %v277 = vunpack.c.l.b16 %v105
    %v278 = vunpack.c.l.b16 %v106
    %v279 = vunpack.c.l.b16 %v107
    %v280 = vunpack.c.l.b16 %v108
    %v281 = vunpack.c.l.b16 %v109
    %v282 = vunpack.c.l.b16 %v110
    %v283 = vunpack.c.l.b16 %v111
    %v284 = vunpack.c.l.b16 %v112
    %v285 = vunpack.c.l.b16 %v113
    %v286 = vunpack.c.l.b16 %v114
    %v287 = vunpack.c.l.b16 %v115
    %v288 = vunpack.c.l.b16 %v116
    %v289 = vunpack.c.l.b16 %v117
    %v290 = vunpack.c.l.b16 %v118
    %v291 = vpack.c.b16 %v218, %v217
    %v292 = vpack.c.b16 %v220, %v219
    %v293 = vpack.c.b16 %v222, %v221
    %v294 = vpack.c.b16 %v224, %v223
    %v295 = vpack.c.b16 %v226, %v225
    %v296 = vpack.c.b16 %v228, %v227
    %v297 = vpack.c.b16 %v230, %v229
    %v298 = vpack.c.b16 %v232, %v231
    %v299 = vpack.c.b16 %v234, %v233
    %v300 = vpack.c.b16 %v236, %v235
    %v301 = vpack.c.b16 %v238, %v237
    %v302 = vpack.c.b16 %v240, %v239
    %v303 = vpack.c.b16 %v242, %v241
    %v304 = vpack.c.b16 %v244, %v243
    %v305 = vpack.c.b16 %v246, %v245
    %v306 = vpack.c.b16 %v248, %v247
    %v307 = vpack.c.b16 %v250, %v249
    %v308 = vpack.c.b16 %v252, %v251
    %v309 = vpack.c.b16 %v254, %v253
    %v310 = vpack.c.b16 %v256, %v255
    %v311 = vpack.c.b16 %v258, %v257
    %v312 = vpack.c.b16 %v260, %v259
    %v313 = vpack.c.b16 %v262, %v261
    %v314 = vpack.c.b16 %v264, %v263
    %v315 = vpack.c.b16 %v266, %v265
    %v316 = vpack.c.b16 %v268, %v267
    %v317 = vpack.c.b16 %v270, %v269
    %v318 = vpack.c.b16 %v272, %v271
    %v319 = vpack.c.b16 %v274, %v273
    %v320 = vpack.c.b16 %v276, %v275
    %v321 = vpack.c.b16 %v278, %v277
    %v322 = vpack.c.b16 %v280, %v279
    %v323 = vpack.c.b16 %v282, %v281
    %v324 = vpack.c.b16 %v284, %v283
    %v325 = vpack.c.b16 %v286, %v285
    %v326 = vpack.c.b16 %v288, %v287
    %v327 = vpack.c.b16 %v290, %v289
    %vm364 = vcmask 621568
    %v366 = vsel %vm364, %v138, 0
    %vm368 = vcmask 1045504
    %v370 = vsel %vm368, %v327, 0
    %372 = vmatprep.subr.bf16.mxu0 0
    %373 = vmatpush1.bf16.msra.mxu0 %v291
    %374 = vmatprep.subr.bf16.mxu0 0
    %375 = vmatpush1.bf16.msra.mxu0 %v292
    %376 = vmatprep.subr.bf16.mxu0 0
    %377 = vmatpush1.bf16.msra.mxu0 %v293
    %378 = vmatprep.subr.bf16.mxu0 0
    %379 = vmatpush1.bf16.msra.mxu0 %v294
    %380 = vmatprep.subr.bf16.mxu0 0
    %381 = vmatpush1.bf16.msra.mxu0 %v295
    %382 = vmatprep.subr.bf16.mxu0 0
    %383 = vmatpush1.bf16.msra.mxu0 %v296
    %384 = vmatprep.subr.bf16.mxu0 0
    %385 = vmatpush1.bf16.msra.mxu0 %v297
    %386 = vmatprep.subr.bf16.mxu0 0
    %387 = vmatpush1.bf16.msra.mxu0 %v298
    %388 = vmatprep.subr.bf16.mxu0 0
    %389 = vmatpush1.bf16.msra.mxu0 %v299
    %390 = vmatprep.subr.bf16.mxu0 0
    %391 = vmatpush1.bf16.msra.mxu0 %v300
    %392 = vmatprep.subr.bf16.mxu0 0
    %393 = vmatpush1.bf16.msra.mxu0 %v301
    %394 = vmatprep.subr.bf16.mxu0 0
    %395 = vmatpush1.bf16.msra.mxu0 %v302
    %396 = vmatprep.subr.bf16.mxu0 0
    %397 = vmatpush1.bf16.msra.mxu0 %v303
    %398 = vmatprep.subr.bf16.mxu0 0
    %399 = vmatpush1.bf16.msra.mxu0 %v304
    %400 = vmatprep.subr.bf16.mxu0 0
    %401 = vmatpush1.bf16.msra.mxu0 %v305
    %402 = vmatprep.subr.bf16.mxu0 0
    %403 = vmatpush1.bf16.msra.mxu0 %v306
    %404 = vmatprep.mubr.bf16.mxu0 %v135
    %405 = vmatmul.mubr.bf16.gmra.mrb[0].mxu0 %v134
    %v406 = vpop.f32.mrb[0].mxu0
    %v407 = vadd.f32 %v124, %v406
    %v408 = vpop.f32.mrb[0].mxu0
    %v409 = vpop.f32.mrb[0].mxu0
    %v410 = vpop.f32.mrb[0].mxu0
    %411 = vdwg.mxu0
    %412 = vmatprep.subr.bf16.mxu0 0
    %413 = vmatpush1.bf16.msra.mxu0 %v307
    %414 = vmatprep.subr.bf16.mxu0 0
    %415 = vmatpush1.bf16.msra.mxu0 %v308
    %416 = vmatprep.subr.bf16.mxu0 0
    %417 = vmatpush1.bf16.msra.mxu0 %v309
    %418 = vmatprep.subr.bf16.mxu0 0
    %419 = vmatpush1.bf16.msra.mxu0 %v310
    %420 = vmatprep.subr.bf16.mxu0 0
    %421 = vmatpush1.bf16.msra.mxu0 %v311
    %422 = vmatprep.subr.bf16.mxu0 0
    %423 = vmatpush1.bf16.msra.mxu0 %v312
    %424 = vmatprep.subr.bf16.mxu0 0
    %425 = vmatpush1.bf16.msra.mxu0 %v313
    %426 = vmatprep.subr.bf16.mxu0 0
    %427 = vmatpush1.bf16.msra.mxu0 %v314
    %428 = vmatprep.subr.bf16.mxu0 0
    %429 = vmatpush1.bf16.msra.mxu0 %v315
    %430 = vmatprep.subr.bf16.mxu0 0
    %431 = vmatpush1.bf16.msra.mxu0 %v316
    %432 = vmatprep.subr.bf16.mxu0 0
    %433 = vmatpush1.bf16.msra.mxu0 %v317
    %434 = vmatprep.subr.bf16.mxu0 0
    %435 = vmatpush1.bf16.msra.mxu0 %v318
    %436 = vmatprep.subr.bf16.mxu0 0
    %437 = vmatpush1.bf16.msra.mxu0 %v319
    %438 = vmatprep.subr.bf16.mxu0 0
    %439 = vmatpush1.bf16.msra.mxu0 %v320
    %440 = vmatprep.subr.bf16.mxu0 0
    %441 = vmatpush1.bf16.msra.mxu0 %v321
    %442 = vmatprep.subr.bf16.mxu0 0
    %443 = vmatpush1.bf16.msra.mxu0 %v322
    %444 = vmatprep.mubr.bf16.mxu0 %v137
    %445 = vmatmul.mubr.bf16.gmra.mrb[0].mxu0 %v136
    %v446 = vpop.f32.mrb[0].mxu0
    %v447 = vadd.f32 %v407, %v446
    %v448 = vpop.f32.mrb[0].mxu0
    %v449 = vpop.f32.mrb[0].mxu0
    %v450 = vpop.f32.mrb[0].mxu0
    %451 = vdwg.mxu0
    %452 = vmatprep.subr.bf16.mxu0 0
    %453 = vmatpush1.bf16.msra.mxu0 %v323
    %454 = vmatprep.subr.bf16.mxu0 0
    %455 = vmatpush1.bf16.msra.mxu0 %v324
    %456 = vmatprep.subr.bf16.mxu0 0
    %457 = vmatpush1.bf16.msra.mxu0 %v325
    %458 = vmatprep.subr.bf16.mxu0 0
    %459 = vmatpush1.bf16.msra.mxu0 %v326
    %460 = vmatprep.subr.bf16.mxu0 0
    %461 = vmatpush1.bf16.msra.mxu0 %v370
    %462 = vmatprep.subr.bf16.mxu0 0
    %463 = vmatpush1.bf16.msra.mxu0 0
    %464 = vmatprep.subr.bf16.mxu0 0
    %465 = vmatpush1.bf16.msra.mxu0 0
    %466 = vmatprep.subr.bf16.mxu0 0
    %467 = vmatpush1.bf16.msra.mxu0 0
    %468 = vmatprep.subr.bf16.mxu0 0
    %469 = vmatpush1.bf16.msra.mxu0 0
    %470 = vmatprep.subr.bf16.mxu0 0
    %471 = vmatpush1.bf16.msra.mxu0 0
    %472 = vmatprep.subr.bf16.mxu0 0
    %473 = vmatpush1.bf16.msra.mxu0 0
    %474 = vmatprep.subr.bf16.mxu0 0
    %475 = vmatpush1.bf16.msra.mxu0 0
    %476 = vmatprep.subr.bf16.mxu0 0
    %477 = vmatpush1.bf16.msra.mxu0 0
    %478 = vmatprep.subr.bf16.mxu0 0
    %479 = vmatpush1.bf16.msra.mxu0 0
    %480 = vmatprep.subr.bf16.mxu0 0
    %481 = vmatpush1.bf16.msra.mxu0 0
    %482 = vmatprep.subr.bf16.mxu0 0
    %483 = vmatpush1.bf16.msra.mxu0 0
    %484 = vmatprep.mubr.bf16.mxu0 0
    %485 = vmatmul.mubr.bf16.gmra.mrb[0].mxu0 %v366
    %v486 = vpop.f32.mrb[0].mxu0
    %v487 = vadd.f32 %v447, %v486
    %v488 = vpop.f32.mrb[0].mxu0
    %v489 = vpop.f32.mrb[0].mxu0
    %v490 = vpop.f32.mrb[0].mxu0
    %491 = vdwg.mxu0
    %v492 = vpack.c.bf16 %v487, %v487
    %493 = vst [vmem:[#allocation7] sm:$0xf] %v492
    // Predicated region
    $region22: #{tpu_custom_call.1} parent=1 // pred_check
      _
    $region23: #{tpu_custom_call.1} parent=1 // pred_check_branch
      %495 = sbr.rel (0) target = $region25
    $region24: #{tpu_custom_call.1} parent=1 // pred_region
      %s497 = ssub.s32 64, 64
      %498 = vsyncadd [#allocation4], %s497
      %s500 = sshll.u32 [#allocation7], 4
      %s501 = int_to_ptr.vmem [resolvable:$true] %s500
      %503 = dma.vmem_to_hbm [thread:$0]  %s501, 64, %s3, [#allocation4]
    $region25: #{tpu_custom_call.1} parent=1 // pred_fallthru
      _
    // Predicated region
    $region26: #{tpu_custom_call.1} parent=1 // pred_check
      _
    $region27: #{tpu_custom_call.1} parent=1 // pred_check_branch
      %505 = sbr.rel (0) target = $region29
    $region28: #{tpu_custom_call.1} parent=1 // pred_region
      %506 = dma.done [#allocation4], 64
    $region29: #{tpu_custom_call.1} parent=1 // pred_fallthru
      _
    %507 = vsyncpa [#allocation3], 1
    %508 = vsyncpa [#allocation6], 1
    %509 = vsyncpa [#allocation4], 1

</llo_original>
